<compile_context>
chip_gen: v7x
topology: tpu7x:2x2x1
jax: 0.10.0
libtpu: 0.0.40
codegen_flags: <defaults>
</compile_context>

<pallas_src>
import math
import functools

import jax
import jax.numpy as jnp
from jax import lax
from jax.experimental import pallas as pl
from jax.experimental.pallas import tpu as pltpu
from jax.scipy.linalg import lu as jsp_lu


def ucs_decode_kernel(bounds_ref, y_ref, a_ref, phi_ref, d_ref, out_ref,
                      *, lamda, rho, admm_iterations, k):
    """Batched ADMM decode (UCS.forward hot path) — runs fully in VMEM."""
    y = y_ref[...]            # (B, M) f32
    a = a_ref[...]            # (M, A) f32
    phi = phi_ref[...]        # (S, A) f32
    d = d_ref[...]            # (1, A) f32 = diag(inv(L)) * diag(inv(U))

    B = y.shape[0]
    S, A = phi.shape

    min_x = bounds_ref[0]
    max_x = bounds_ref[1]

    inv_sqrt_a = 1.0 / math.sqrt(A)
    thr = lamda / rho
    k_f = float(k)

    # ---- loop-invariant hoists (JAX does not CSE broadcast/iota across unrolled iters) ----
    ii = lax.broadcasted_iota(jnp.int32, (S, S), 0)
    jj = lax.broadcasted_iota(jnp.int32, (S, S), 1)
    tie_lt = ii < jj                                    # top-k tie break: lower index wins
    ones_row = jnp.full((1, S), 1.0, jnp.float32)       # MXU rank-reduction operand
    inv_b = jnp.full((1, B), 1.0 / B, jnp.float32)      # MXU batch-mean operand

    # x0 = einsum('am,bm->ba', a.T, y) == y @ a   (computed once)
    x0 = lax.dot_general(y, a, (((1,), (0,)), ((), ())),
                         preferred_element_type=jnp.float32)
    x0_d = d * x0             # fold the L/U diagonal product into x0 once
    d_rho = d * rho           # (1, A), once

    u = jnp.zeros((B, S), jnp.float32)
    z = jnp.zeros((B, S), jnp.float32)
    x_hat = jnp.zeros((B, A), jnp.float32)

    for _ in range(admm_iterations):      # static unroll (admm_iterations is small)
        # corr = (z - u) @ phi ; L/U diagonal scalings + rho folded into x0_d / d_rho
        corr = lax.dot_general(z - u, phi, (((1,), (0,)), ((), ())),
                               preferred_element_type=jnp.float32)      # (B, A)
        x_hat = x0_d + d_rho * corr

        # fx = einsum('sa,ba->bs', phi, x_hat) == x_hat @ phi.T  -> (B, S)
        fx = lax.dot_general(x_hat, phi, (((1,), (1,)), ((), ())),
                             preferred_element_type=jnp.float32)

        # ---- sparsify_fx_attention (scores == fx / sqrt(A)) ----
        scores = fx * inv_sqrt_a
        scores = scores - jnp.max(scores, axis=-1, keepdims=True)
        es = jnp.exp(scores)
        sm = es * pl.reciprocal(jnp.sum(es, axis=-1, keepdims=True), approx=True)
        # TODO(synk): reference applies F.dropout(p=0.1, training=True) here; treated as
        # eval-mode identity to keep the kernel deterministic (torch RNG not reproducible).

        # batch-mean in both orientations via the (idle) MXU — no (S,S) or (1,S) transpose
        sc_row = lax.dot_general(inv_b, sm, (((1,), (0,)), ((), ())),
                                 preferred_element_type=jnp.float32)    # (1, S)
        sc_col = lax.dot_general(sm, inv_b, (((0,), (1,)), ((), ())),
                                 preferred_element_type=jnp.float32)    # (S, 1)

        # exact top-k mask via pairwise rank (ties broken by lower index, like torch.topk);
        # the O(S^2) reduction runs on the MXU so the VPU only does comparisons/selects.
        sci = jnp.broadcast_to(sc_col, (S, S))          # [i, j] = mean_score[i] (lane bcast)
        scj = jnp.broadcast_to(sc_row, (S, S))          # [i, j] = mean_score[j] (sublane bcast)
        beats = jnp.logical_or(sci > scj,
                               jnp.logical_and(sci == scj, tie_lt)).astype(jnp.float32)
        # NOTE: for the large default dictionary (S=2352 -> ~22 MiB beats matrix), tile this
        # rank reduction over row blocks of `beats` instead of materialising it whole.
        rank = lax.dot_general(ones_row, beats, (((1,), (0,)), ((), ())),
                               preferred_element_type=jnp.float32)      # (1, S)
        mask = (rank < k_f).astype(jnp.float32)

        fxu = fx * mask + u

        # ShrinkageActivation via soft-threshold identity: z = fxu - clip(fxu, -thr, thr)
        clipped = jnp.clip(fxu, -thr, thr)
        z = fxu - clipped
        u = u + clipped           # == u + fxu - z

    out_ref[...] = jnp.clip(x_hat, min_x, max_x)


def ucs_forward(y, x, a, phi, *, lamda, rho, admm_iterations, sparsity_percentage):
    """Flatten inputs (NCHW -> (B, C*H*W)), fold the multiplier diagonals, call the kernel."""
    B = x.shape[0]
    x2 = x.reshape(B, -1).astype(jnp.float32)
    y2 = y.reshape(B, -1).astype(jnp.float32)
    a32 = a.astype(jnp.float32)
    phi32 = phi.astype(jnp.float32)
    S, A = phi32.shape
    k = max(int(sparsity_percentage * S), 1)

    # multiplier(): only the diagonals of inv(L)/inv(U) are consumed by the 'aa,ba->ba'
    # einsums, and diag(inv(T)) == 1/diag(T) for triangular T, so the full triangular
    # inverses are never formed.
    # TODO(synk): the LU factorisation itself has no clean Pallas equivalent; it is a
    # parameter-only setup computed here with XLA (tiny (A,A) problem).
    m = a32.T @ a32 + rho * (phi32.T @ phi32)
    _, L, U = jsp_lu(m)
    d = (1.0 / (jnp.diagonal(L) * jnp.diagonal(U))).reshape(1, A).astype(jnp.float32)

    # clamp bounds as SMEM scalars (forward: torch.min(x) / torch.max(x))
    bounds = jnp.stack([jnp.min(x2), jnp.max(x2)]).astype(jnp.float32)   # (2,)

    kernel = functools.partial(ucs_decode_kernel, lamda=float(lamda), rho=float(rho),
                               admm_iterations=int(admm_iterations), k=k)
    vmem = pl.BlockSpec(memory_space=pltpu.MemorySpace.VMEM)
    smem = pl.BlockSpec(memory_space=pltpu.MemorySpace.SMEM)
    return pl.pallas_call(
        kernel,
        out_shape=jax.ShapeDtypeStruct((B, A), jnp.float32),
        in_specs=[smem, vmem, vmem, vmem, vmem],
        out_specs=vmem,
        compiler_params=pltpu.CompilerParams(vmem_limit_bytes=32 * 1024 * 1024),
    )(bounds, y2, a32, phi32, d)


if __name__ == "__main__":
    # small, TPU-friendly shapes consistent with the module's forward
    B, C, H, W = 2, 2, 8, 8
    ambient = C * H * W                   # 128
    measurements = 64
    redundancy_multiplier = 3
    S = ambient * redundancy_multiplier   # 384
    lamda, rho = 0.1, 1.0
    admm_iterations = 1
    sparsity_percentage = 0.2

    key = jax.random.PRNGKey(0)
    k1, k2, k3, k4 = jax.random.split(key, 4)

    # parameters (deterministic synthetic init, mirroring __init__)
    a = jax.random.normal(k1, (measurements, ambient), jnp.float32)                   # torch.randn
    phi = jax.random.normal(k2, (S, ambient), jnp.float32) * jnp.sqrt(2.0 / ambient)  # kaiming_normal_

    # inputs: x is NCHW; y is a noisy linear measurement of flattened x (measure_x)
    x = jax.random.normal(k3, (B, C, H, W), jnp.float32)
    x_flat = x.reshape(B, -1)
    y = x_flat @ a.T + 1e-4 * jax.random.normal(k4, (B, measurements), jnp.float32)

    out = ucs_forward(y, x, a, phi, lamda=lamda, rho=rho,
                      admm_iterations=admm_iterations,
                      sparsity_percentage=sparsity_percentage)
    jax.block_until_ready(out)
    assert out.shape == (B, ambient) and out.dtype == jnp.float32
    assert bool(jnp.all(jnp.isfinite(out)))
    print("KERNEL_OK")
</pallas_src>

<mosaic_0001>
module attributes {stable_mosaic.version = 11 : i64} {
  func.func @ucs_decode_kernel(%arg0: memref<2xf32, #tpu.memory_space<smem>>, %arg1: memref<2x64xf32, #tpu.memory_space<vmem>>, %arg2: memref<64x128xf32, #tpu.memory_space<vmem>>, %arg3: memref<384x128xf32, #tpu.memory_space<vmem>>, %arg4: memref<1x128xf32, #tpu.memory_space<vmem>>, %arg5: memref<2x128xf32, #tpu.memory_space<vmem>>) attributes {dimension_semantics = [], scalar_prefetch = 0 : i64, scratch_operands = 0 : i64, tpu.core_type = #tpu.core_type<tc>} {
    %c0 = arith.constant 0 : index
    %c0_0 = arith.constant 0 : index
    %0 = vector.load %arg1[%c0, %c0_0] : memref<2x64xf32, #tpu.memory_space<vmem>>, vector<2x64xf32>
    %c0_1 = arith.constant 0 : index
    %c0_2 = arith.constant 0 : index
    %1 = vector.load %arg2[%c0_1, %c0_2] : memref<64x128xf32, #tpu.memory_space<vmem>>, vector<64x128xf32>
    %c0_3 = arith.constant 0 : index
    %c0_4 = arith.constant 0 : index
    %2 = vector.load %arg3[%c0_3, %c0_4] : memref<384x128xf32, #tpu.memory_space<vmem>>, vector<384x128xf32>
    %c0_5 = arith.constant 0 : index
    %c0_6 = arith.constant 0 : index
    %3 = vector.load %arg4[%c0_5, %c0_6] : memref<1x128xf32, #tpu.memory_space<vmem>>, vector<1x128xf32>
    %c0_7 = arith.constant 0 : index
    %4 = memref.load %arg0[%c0_7] : memref<2xf32, #tpu.memory_space<smem>>
    %c1 = arith.constant 1 : index
    %5 = memref.load %arg0[%c1] : memref<2xf32, #tpu.memory_space<smem>>
    %cst = arith.constant dense<0.000000e+00> : vector<2x128xf32>
    %6 = tpu.matmul %0, %1, %cst {dimension_numbers = #tpu.dot_dimension_numbers<[1], [0], [0], [1], [0, 0, 1, 1], [], []>} : vector<2x64xf32>, vector<64x128xf32>, vector<2x128xf32> -> vector<2x128xf32>
    %7 = vector.broadcast %3 : vector<1x128xf32> to vector<2x128xf32>
    %8 = arith.mulf %7, %6 : vector<2x128xf32>
    %cst_8 = arith.constant 1.000000e+00 : f32
    %9 = vector.broadcast %cst_8 : f32 to vector<1x128xf32>
    %10 = arith.mulf %3, %9 : vector<1x128xf32>
    %cst_9 = arith.constant 0.000000e+00 : f32
    %11 = vector.broadcast %cst_9 : f32 to vector<2x384xf32>
    %cst_10 = arith.constant 0.000000e+00 : f32
    %12 = vector.broadcast %cst_10 : f32 to vector<2x384xf32>
    %13 = arith.subf %12, %11 : vector<2x384xf32>
    %cst_11 = arith.constant dense<0.000000e+00> : vector<2x128xf32>
    %14 = tpu.matmul %13, %2, %cst_11 {dimension_numbers = #tpu.dot_dimension_numbers<[1], [0], [0], [1], [0, 0, 1, 1], [], []>} : vector<2x384xf32>, vector<384x128xf32>, vector<2x128xf32> -> vector<2x128xf32>
    %15 = vector.broadcast %10 : vector<1x128xf32> to vector<2x128xf32>
    %16 = arith.mulf %15, %14 : vector<2x128xf32>
    %17 = arith.addf %8, %16 : vector<2x128xf32>
    %18 = vector.broadcast %4 : f32 to vector<2x128xf32>
    %19 = arith.maximumf %18, %17 : vector<2x128xf32>
    %20 = vector.broadcast %5 : f32 to vector<2x128xf32>
    %21 = arith.minimumf %20, %19 : vector<2x128xf32>
    %c0_12 = arith.constant 0 : index
    %c0_13 = arith.constant 0 : index
    %22 = vector.load %arg5[%c0_12, %c0_13] : memref<2x128xf32, #tpu.memory_space<vmem>>, vector<2x128xf32>
    tpu.vector_store %arg5[%c0_12, %c0_13], %21 {strides = array<i32>} : memref<2x128xf32, #tpu.memory_space<vmem>>, vector<2x128xf32>,
    return
  }
}

</mosaic_0001>

<llo_original>
// kernel: tpu_custom_call.1
$region0: #{tpu_custom_call.1}
  #allocation0 [shape = 'u32[]', space=smem, size = 0x4, offset = 0x4, fixed_abs, tag = 'smem constant byte address 0x4 - core index']
  #allocation1 [shape = 'u32[144,128]{1,0:T(1,128)}', space=vmem, size = 0x12000, scoped, tag = 'internal scratch']
  %s0 = inlined_call_operand.hbm [shape: f32[2], index: 0, kind: input, shape index: {}]
  %s1 = inlined_call_operand.vmem [shape: f32[2,64], index: 1, kind: input, shape index: {}]
  %s2 = inlined_call_operand.hbm [shape: f32[64,128], index: 2, kind: input, shape index: {}]
  %s3 = inlined_call_operand.hbm [shape: f32[384,128], index: 3, kind: input, shape index: {}]
  %s4 = inlined_call_operand.vmem [shape: f32[1,128], index: 4, kind: input, shape index: {}]
  %s5 = inlined_call_operand.hbm [shape: f32[2,128], index: 5, kind: output, shape index: {}]
  %s6 = sld [smem:[#allocation0]]
  $region42: #{tpu_custom_call.1} parent=0
    _
  %s8 = ssub.s32 1, %s6
  %s9 = scalar_select 0, %s8, %s6
  $region1: #{tpu_custom_call.1} parent=0
    #allocation2 [shape = 'u8[512]{0}', space=smem, size = 0x200, scoped, tag = 'input window, operand 0, single buffered']
    #allocation3 [shape = 's32[1]{0}', space=sflag, size = 0x4, scoped, tag = 'scoped memory for tpu_custom_call.1']
    #allocation4 [shape = 's32[1]{0}', space=sflag, size = 0x4, scoped, tag = 'scoped memory for tpu_custom_call.1']
    #allocation5 [shape = 's32[1]{0}', space=sflag, size = 0x4, scoped, tag = 'scoped memory for tpu_custom_call.1']
    #allocation6 [shape = 'u8[32768]{0}', space=vmem, size = 0x8000, scoped, tag = 'input window, operand 2, single buffered']
    #allocation7 [shape = 'u8[196608]{0}', space=vmem, size = 0x30000, scoped, tag = 'input window, operand 3, single buffered']
    #allocation8 [shape = 's32[1]{0}', space=sflag, size = 0x4, scoped, tag = 'scoped memory for tpu_custom_call.1']
    #allocation9 [shape = 'u8[1024]{0}', space=vmem, size = 0x400, scoped, tag = 'output window, operand 0, single buffered']
    %10 = vsyncpa [#allocation5], 0
    %11 = vsyncpa [#allocation3], 0
    %12 = vsyncpa [#allocation8], 0
    %13 = vsyncpa [#allocation4], 0
    // Predicated region
    $region2: #{tpu_custom_call.1} parent=1 // pred_check
      _
    $region3: #{tpu_custom_call.1} parent=1 // pred_check_branch
      %15 = sbr.rel (0) target = $region5
    $region4: #{tpu_custom_call.1} parent=1 // pred_region
      %s17 = ssub.s32 16, 16
      %18 = vsyncadd [#allocation5], %s17
      %21 = dma.hbm_to_smem %s0, 16, [#allocation2], [#allocation5]
    $region5: #{tpu_custom_call.1} parent=1 // pred_fallthru
      _
    // Predicated region
    $region6: #{tpu_custom_call.1} parent=1 // pred_check
      _
    $region7: #{tpu_custom_call.1} parent=1 // pred_check_branch
      %23 = sbr.rel (0) target = $region9
    $region8: #{tpu_custom_call.1} parent=1 // pred_region
      _
    $region9: #{tpu_custom_call.1} parent=1 // pred_fallthru
      _
    // Predicated region
    $region10: #{tpu_custom_call.1} parent=1 // pred_check
      _
    $region11: #{tpu_custom_call.1} parent=1 // pred_check_branch
      %25 = sbr.rel (0) target = $region13
    $region12: #{tpu_custom_call.1} parent=1 // pred_region
      %s27 = ssub.s32 1024, 1024
      %28 = vsyncadd [#allocation3], %s27
      %s29 = sshll.u32 [#allocation6], 4
      %s30 = int_to_ptr.vmem [resolvable:$true] %s29
      %35 = dma.hbm_to_vmem [thread:$0]  %s2, 1024, %s30, [#allocation3], 128, 128, 8
    $region13: #{tpu_custom_call.1} parent=1 // pred_fallthru
      _
    // Predicated region
    $region14: #{tpu_custom_call.1} parent=1 // pred_check
      _
    $region15: #{tpu_custom_call.1} parent=1 // pred_check_branch
      %37 = sbr.rel (0) target = $region17
    $region16: #{tpu_custom_call.1} parent=1 // pred_region
      %s39 = ssub.s32 6144, 6144
      %40 = vsyncadd [#allocation8], %s39
      %s41 = sshll.u32 [#allocation7], 4
      %s42 = int_to_ptr.vmem [resolvable:$true] %s41
      %47 = dma.hbm_to_vmem [thread:$0]  %s3, 6144, %s42, [#allocation8], 128, 128, 8
    $region17: #{tpu_custom_call.1} parent=1 // pred_fallthru
      _
    // Predicated region
    $region18: #{tpu_custom_call.1} parent=1 // pred_check
      _
    $region19: #{tpu_custom_call.1} parent=1 // pred_check_branch
      %49 = sbr.rel (0) target = $region21
    $region20: #{tpu_custom_call.1} parent=1 // pred_region
      _
    $region21: #{tpu_custom_call.1} parent=1 // pred_fallthru
      _
    // Predicated region
    $region22: #{tpu_custom_call.1} parent=1 // pred_check
      _
    $region23: #{tpu_custom_call.1} parent=1 // pred_check_branch
      %51 = sbr.rel (0) target = $region25
    $region24: #{tpu_custom_call.1} parent=1 // pred_region
      %52 = dma.done [#allocation5], 16
    $region25: #{tpu_custom_call.1} parent=1 // pred_fallthru
      _
    // Predicated region
    $region26: #{tpu_custom_call.1} parent=1 // pred_check
      _
    $region27: #{tpu_custom_call.1} parent=1 // pred_check_branch
      %54 = sbr.rel (0) target = $region29
    $region28: #{tpu_custom_call.1} parent=1 // pred_region
      %55 = dma.done [#allocation3], 1024
    $region29: #{tpu_custom_call.1} parent=1 // pred_fallthru
      _
    // Predicated region
    $region30: #{tpu_custom_call.1} parent=1 // pred_check
      _
    $region31: #{tpu_custom_call.1} parent=1 // pred_check_branch
      %57 = sbr.rel (0) target = $region33
    $region32: #{tpu_custom_call.1} parent=1 // pred_region
      %58 = dma.done [#allocation8], 6144
    $region33: #{tpu_custom_call.1} parent=1 // pred_fallthru
      _
    %59 = sfence
    %v60 = vld [vmem:[%s1] sm:$0x3]
    %v61 = vld [vmem:[#allocation6] sm:$0xff]
    %v62 = vld [vmem:[#allocation6 + $0x8] sm:$0xff]
    %v63 = vld [vmem:[#allocation6 + $0x10] sm:$0xff]
    %v64 = vld [vmem:[#allocation6 + $0x18] sm:$0xff]
    %v65 = vld [vmem:[#allocation6 + $0x20] sm:$0xff]
    %v66 = vld [vmem:[#allocation6 + $0x28] sm:$0xff]
    %v67 = vld [vmem:[#allocation6 + $0x30] sm:$0xff]
    %v68 = vld [vmem:[#allocation6 + $0x38] sm:$0xff]
    %v69 = vld [vmem:[#allocation7] sm:$0xff]
    %v70 = vld [vmem:[#allocation7 + $0x8] sm:$0xff]
    %v71 = vld [vmem:[#allocation7 + $0x10] sm:$0xff]
    %v72 = vld [vmem:[#allocation7 + $0x18] sm:$0xff]
    %v73 = vld [vmem:[#allocation7 + $0x20] sm:$0xff]
    %v74 = vld [vmem:[#allocation7 + $0x28] sm:$0xff]
    %v75 = vld [vmem:[#allocation7 + $0x30] sm:$0xff]
    %v76 = vld [vmem:[#allocation7 + $0x38] sm:$0xff]
    %v77 = vld [vmem:[#allocation7 + $0x40] sm:$0xff]
    %v78 = vld [vmem:[#allocation7 + $0x48] sm:$0xff]
    %v79 = vld [vmem:[#allocation7 + $0x50] sm:$0xff]
    %v80 = vld [vmem:[#allocation7 + $0x58] sm:$0xff]
    %v81 = vld [vmem:[#allocation7 + $0x60] sm:$0xff]
    %v82 = vld [vmem:[#allocation7 + $0x68] sm:$0xff]
    %v83 = vld [vmem:[#allocation7 + $0x70] sm:$0xff]
    %v84 = vld [vmem:[#allocation7 + $0x78] sm:$0xff]
    %v85 = vld [vmem:[#allocation7 + $0x80] sm:$0xff]
    %v86 = vld [vmem:[#allocation7 + $0x88] sm:$0xff]
    %v87 = vld [vmem:[#allocation7 + $0x90] sm:$0xff]
    %v88 = vld [vmem:[#allocation7 + $0x98] sm:$0xff]
    %v89 = vld [vmem:[#allocation7 + $0xa0] sm:$0xff]
    %v90 = vld [vmem:[#allocation7 + $0xa8] sm:$0xff]
    %v91 = vld [vmem:[#allocation7 + $0xb0] sm:$0xff]
    %v92 = vld [vmem:[#allocation7 + $0xb8] sm:$0xff]
    %v93 = vld [vmem:[#allocation7 + $0xc0] sm:$0xff]
    %v94 = vld [vmem:[#allocation7 + $0xc8] sm:$0xff]
    %v95 = vld [vmem:[#allocation7 + $0xd0] sm:$0xff]
    %v96 = vld [vmem:[#allocation7 + $0xd8] sm:$0xff]
    %v97 = vld [vmem:[#allocation7 + $0xe0] sm:$0xff]
    %v98 = vld [vmem:[#allocation7 + $0xe8] sm:$0xff]
    %v99 = vld [vmem:[#allocation7 + $0xf0] sm:$0xff]
    %v100 = vld [vmem:[#allocation7 + $0xf8] sm:$0xff]
    %v101 = vld [vmem:[#allocation7 + $0x100] sm:$0xff]
    %v102 = vld [vmem:[#allocation7 + $0x108] sm:$0xff]
    %v103 = vld [vmem:[#allocation7 + $0x110] sm:$0xff]
    %v104 = vld [vmem:[#allocation7 + $0x118] sm:$0xff]
    %v105 = vld [vmem:[#allocation7 + $0x120] sm:$0xff]
    %v106 = vld [vmem:[#allocation7 + $0x128] sm:$0xff]
    %v107 = vld [vmem:[#allocation7 + $0x130] sm:$0xff]
    %v108 = vld [vmem:[#allocation7 + $0x138] sm:$0xff]
    %v109 = vld [vmem:[#allocation7 + $0x140] sm:$0xff]
    %v110 = vld [vmem:[#allocation7 + $0x148] sm:$0xff]
    %v111 = vld [vmem:[#allocation7 + $0x150] sm:$0xff]
    %v112 = vld [vmem:[#allocation7 + $0x158] sm:$0xff]
    %v113 = vld [vmem:[#allocation7 + $0x160] sm:$0xff]
    %v114 = vld [vmem:[#allocation7 + $0x168] sm:$0xff]
    %v115 = vld [vmem:[#allocation7 + $0x170] sm:$0xff]
    %v116 = vld [vmem:[#allocation7 + $0x178] sm:$0xff]
    %v117 = vld [vmem:[%s4] sm:$0x1]
    %s118 = sld [smem:[#allocation2]]
    %s119 = sld [smem:[#allocation2 + $0x1]]
    %vm120 = vcmask 523264
    %v122 = vsel %vm120, %v60, 0
    %124 = vmatprep.subr.mxu0 0.0
    %125 = vmatpush1.msra.mxu0 %v61
    %126 = vmatprep.subr.mxu0 0.0
    %127 = vmatpush1.msra.mxu0 %v62
    %128 = vmatprep.subr.mxu0 0.0
    %129 = vmatpush1.msra.mxu0 %v63
    %130 = vmatprep.subr.mxu0 0.0
    %131 = vmatpush1.msra.mxu0 %v64
    %132 = vmatprep.subr.mxu0 0.0
    %133 = vmatpush1.msra.mxu0 %v65
    %134 = vmatprep.subr.mxu0 0.0
    %135 = vmatpush1.msra.mxu0 %v66
    %136 = vmatprep.subr.mxu0 0.0
    %137 = vmatpush1.msra.mxu0 %v67
    %138 = vmatprep.subr.mxu0 0.0
    %139 = vmatpush1.msra.mxu0 %v68
    %140 = vmatprep.subr.mxu0 0.0
    %141 = vmatpush1.msra.mxu0 0.0
    %142 = vmatprep.subr.mxu0 0.0
    %143 = vmatpush1.msra.mxu0 0.0
    %144 = vmatprep.subr.mxu0 0.0
    %145 = vmatpush1.msra.mxu0 0.0
    %146 = vmatprep.subr.mxu0 0.0
    %147 = vmatpush1.msra.mxu0 0.0
    %148 = vmatprep.subr.mxu0 0.0
    %149 = vmatpush1.msra.mxu0 0.0
    %150 = vmatprep.subr.mxu0 0.0
    %151 = vmatpush1.msra.mxu0 0.0
    %152 = vmatprep.subr.mxu0 0.0
    %153 = vmatpush1.msra.mxu0 0.0
    %154 = vmatprep.subr.mxu0 0.0
    %155 = vmatpush1.msra.mxu0 0.0
    %156 = vmatprep.subr.mxu0 0.0
    %157 = vmatpush1.msra.mxu0 0.0
    %158 = vmatprep.subr.mxu0 0.0
    %159 = vmatpush1.msra.mxu0 0.0
    %160 = vmatprep.subr.mxu0 0.0
    %161 = vmatpush1.msra.mxu0 0.0
    %162 = vmatprep.subr.mxu0 0.0
    %163 = vmatpush1.msra.mxu0 0.0
    %164 = vmatprep.subr.mxu0 0.0
    %165 = vmatpush1.msra.mxu0 0.0
    %166 = vmatprep.subr.mxu0 0.0
    %167 = vmatpush1.msra.mxu0 0.0
    %168 = vmatprep.subr.mxu0 0.0
    %169 = vmatpush1.msra.mxu0 0.0
    %170 = vmatprep.subr.mxu0 0.0
    %171 = vmatpush1.msra.mxu0 0.0
    %172 = vmatprep.subr.mxu0 0.0
    %173 = vmatpush1.msra.mxu0 0.0
    %174 = vmatprep.subr.mxu0 0.0
    %175 = vmatpush1.msra.mxu0 0.0
    %176 = vmatprep.subr.mxu0 0.0
    %177 = vmatpush1.msra.mxu0 0.0
    %178 = vmatprep.subr.mxu0 0.0
    %179 = vmatpush1.msra.mxu0 0.0
    %180 = vmatprep.subr.mxu0 0.0
    %181 = vmatpush1.msra.mxu0 0.0
    %182 = vmatprep.subr.mxu0 0.0
    %183 = vmatpush1.msra.mxu0 0.0
    %184 = vmatprep.subr.mxu0 0.0
    %185 = vmatpush1.msra.mxu0 0.0
    %186 = vmatprep.subr.mxu0 0.0
    %187 = vmatpush1.msra.mxu0 0.0
    %188 = vmatprep.mubr.f32.mxu0 0.0
    %189 = vmatmul.mubr.f32.gmra.mrb[0].mxu0 %v122
    %v190 = vpop.f32.mrb[0].mxu0
    %v191 = vadd.f32 0.0, %v190
    %v192 = vpop.f32.mrb[0].mxu0
    %193 = vdwg.mxu0
    %v195 = vlaneseq
    %v196 = vshrl.u32 %v195, 7
    %v197 = vsub.s32 0, %v196
    %v198 = vrot.slane %v117, %v197
    %v200 = vmul.f32 %v198, %v191
    %201 = vmatprep.subr.mxu0 0.0
    %202 = vmatpush1.msra.mxu0 %v69
    %203 = vmatprep.subr.mxu0 0.0
    %204 = vmatpush1.msra.mxu0 %v70
    %205 = vmatprep.subr.mxu0 0.0
    %206 = vmatpush1.msra.mxu0 %v71
    %207 = vmatprep.subr.mxu0 0.0
    %208 = vmatpush1.msra.mxu0 %v72
    %209 = vmatprep.subr.mxu0 0.0
    %210 = vmatpush1.msra.mxu0 %v73
    %211 = vmatprep.subr.mxu0 0.0
    %212 = vmatpush1.msra.mxu0 %v74
    %213 = vmatprep.subr.mxu0 0.0
    %214 = vmatpush1.msra.mxu0 %v75
    %215 = vmatprep.subr.mxu0 0.0
    %216 = vmatpush1.msra.mxu0 %v76
    %217 = vmatprep.subr.mxu0 0.0
    %218 = vmatpush1.msra.mxu0 %v77
    %219 = vmatprep.subr.mxu0 0.0
    %220 = vmatpush1.msra.mxu0 %v78
    %221 = vmatprep.subr.mxu0 0.0
    %222 = vmatpush1.msra.mxu0 %v79
    %223 = vmatprep.subr.mxu0 0.0
    %224 = vmatpush1.msra.mxu0 %v80
    %225 = vmatprep.subr.mxu0 0.0
    %226 = vmatpush1.msra.mxu0 %v81
    %227 = vmatprep.subr.mxu0 0.0
    %228 = vmatpush1.msra.mxu0 %v82
    %229 = vmatprep.subr.mxu0 0.0
    %230 = vmatpush1.msra.mxu0 %v83
    %231 = vmatprep.subr.mxu0 0.0
    %232 = vmatpush1.msra.mxu0 %v84
    %233 = vmatprep.subr.mxu0 0.0
    %234 = vmatpush1.msra.mxu0 %v85
    %235 = vmatprep.subr.mxu0 0.0
    %236 = vmatpush1.msra.mxu0 %v86
    %237 = vmatprep.subr.mxu0 0.0
    %238 = vmatpush1.msra.mxu0 %v87
    %239 = vmatprep.subr.mxu0 0.0
    %240 = vmatpush1.msra.mxu0 %v88
    %241 = vmatprep.subr.mxu0 0.0
    %242 = vmatpush1.msra.mxu0 %v89
    %243 = vmatprep.subr.mxu0 0.0
    %244 = vmatpush1.msra.mxu0 %v90
    %245 = vmatprep.subr.mxu0 0.0
    %246 = vmatpush1.msra.mxu0 %v91
    %247 = vmatprep.subr.mxu0 0.0
    %248 = vmatpush1.msra.mxu0 %v92
    %249 = vmatprep.subr.mxu0 0.0
    %250 = vmatpush1.msra.mxu0 %v93
    %251 = vmatprep.subr.mxu0 0.0
    %252 = vmatpush1.msra.mxu0 %v94
    %253 = vmatprep.subr.mxu0 0.0
    %254 = vmatpush1.msra.mxu0 %v95
    %255 = vmatprep.subr.mxu0 0.0
    %256 = vmatpush1.msra.mxu0 %v96
    %257 = vmatprep.subr.mxu0 0.0
    %258 = vmatpush1.msra.mxu0 %v97
    %259 = vmatprep.subr.mxu0 0.0
    %260 = vmatpush1.msra.mxu0 %v98
    %261 = vmatprep.subr.mxu0 0.0
    %262 = vmatpush1.msra.mxu0 %v99
    %263 = vmatprep.subr.mxu0 0.0
    %264 = vmatpush1.msra.mxu0 %v100
    %265 = vmatprep.mubr.f32.mxu0 0.0
    %266 = vmatmul.mubr.f32.gmra.mrb[0].mxu0 0.0
    %v267 = vpop.f32.mrb[0].mxu0
    %v268 = vadd.f32 0.0, %v267
    %v269 = vpop.f32.mrb[0].mxu0
    %270 = vdwg.mxu0
    %271 = vmatprep.subr.mxu0 0.0
    %272 = vmatpush1.msra.mxu0 %v101
    %273 = vmatprep.subr.mxu0 0.0
    %274 = vmatpush1.msra.mxu0 %v102
    %275 = vmatprep.subr.mxu0 0.0
    %276 = vmatpush1.msra.mxu0 %v103
    %277 = vmatprep.subr.mxu0 0.0
    %278 = vmatpush1.msra.mxu0 %v104
    %279 = vmatprep.subr.mxu0 0.0
    %280 = vmatpush1.msra.mxu0 %v105
    %281 = vmatprep.subr.mxu0 0.0
    %282 = vmatpush1.msra.mxu0 %v106
    %283 = vmatprep.subr.mxu0 0.0
    %284 = vmatpush1.msra.mxu0 %v107
    %285 = vmatprep.subr.mxu0 0.0
    %286 = vmatpush1.msra.mxu0 %v108
    %287 = vmatprep.subr.mxu0 0.0
    %288 = vmatpush1.msra.mxu0 %v109
    %289 = vmatprep.subr.mxu0 0.0
    %290 = vmatpush1.msra.mxu0 %v110
    %291 = vmatprep.subr.mxu0 0.0
    %292 = vmatpush1.msra.mxu0 %v111
    %293 = vmatprep.subr.mxu0 0.0
    %294 = vmatpush1.msra.mxu0 %v112
    %295 = vmatprep.subr.mxu0 0.0
    %296 = vmatpush1.msra.mxu0 %v113
    %297 = vmatprep.subr.mxu0 0.0
    %298 = vmatpush1.msra.mxu0 %v114
    %299 = vmatprep.subr.mxu0 0.0
    %300 = vmatpush1.msra.mxu0 %v115
    %301 = vmatprep.subr.mxu0 0.0
    %302 = vmatpush1.msra.mxu0 %v116
    %303 = vmatprep.subr.mxu0 0.0
    %304 = vmatpush1.msra.mxu0 0.0
    %305 = vmatprep.subr.mxu0 0.0
    %306 = vmatpush1.msra.mxu0 0.0
    %307 = vmatprep.subr.mxu0 0.0
    %308 = vmatpush1.msra.mxu0 0.0
    %309 = vmatprep.subr.mxu0 0.0
    %310 = vmatpush1.msra.mxu0 0.0
    %311 = vmatprep.subr.mxu0 0.0
    %312 = vmatpush1.msra.mxu0 0.0
    %313 = vmatprep.subr.mxu0 0.0
    %314 = vmatpush1.msra.mxu0 0.0
    %315 = vmatprep.subr.mxu0 0.0
    %316 = vmatpush1.msra.mxu0 0.0
    %317 = vmatprep.subr.mxu0 0.0
    %318 = vmatpush1.msra.mxu0 0.0
    %319 = vmatprep.subr.mxu0 0.0
    %320 = vmatpush1.msra.mxu0 0.0
    %321 = vmatprep.subr.mxu0 0.0
    %322 = vmatpush1.msra.mxu0 0.0
    %323 = vmatprep.subr.mxu0 0.0
    %324 = vmatpush1.msra.mxu0 0.0
    %325 = vmatprep.subr.mxu0 0.0
    %326 = vmatpush1.msra.mxu0 0.0
    %327 = vmatprep.subr.mxu0 0.0
    %328 = vmatpush1.msra.mxu0 0.0
    %329 = vmatprep.subr.mxu0 0.0
    %330 = vmatpush1.msra.mxu0 0.0
    %331 = vmatprep.subr.mxu0 0.0
    %332 = vmatpush1.msra.mxu0 0.0
    %333 = vmatprep.subr.mxu0 0.0
    %334 = vmatpush1.msra.mxu0 0.0
    %335 = vmatprep.mubr.f32.mxu0 0.0
    %336 = vmatmul.mubr.f32.gmra.mrb[0].mxu0 0.0
    %v337 = vpop.f32.mrb[0].mxu0
    %v338 = vadd.f32 %v268, %v337
    %v339 = vpop.f32.mrb[0].mxu0
    %340 = vdwg.mxu0
    %v341 = vmul.f32 %v198, %v338
    %v342 = vadd.f32 %v200, %v341
    %v343 = vstv %s118
    %v344 = vmax.f32 %v343, %v342
    %v345 = vstv %s119
    %v346 = vmin.f32 %v345, %v344
    %347 = vst [vmem:[#allocation9] sm:$0x3] %v346
    // Predicated region
    $region34: #{tpu_custom_call.1} parent=1 // pred_check
      _
    $region35: #{tpu_custom_call.1} parent=1 // pred_check_branch
      %349 = sbr.rel (0) target = $region37
    $region36: #{tpu_custom_call.1} parent=1 // pred_region
      %s351 = ssub.s32 32, 32
      %352 = vsyncadd [#allocation4], %s351
      %s354 = sshll.u32 [#allocation9], 4
      %s355 = int_to_ptr.vmem [resolvable:$true] %s354
      %357 = dma.vmem_to_hbm [thread:$0]  %s355, 32, %s5, [#allocation4]
    $region37: #{tpu_custom_call.1} parent=1 // pred_fallthru
      _
    // Predicated region
    $region38: #{tpu_custom_call.1} parent=1 // pred_check
      _
    $region39: #{tpu_custom_call.1} parent=1 // pred_check_branch
      %359 = sbr.rel (0) target = $region41
    $region40: #{tpu_custom_call.1} parent=1 // pred_region
      %360 = dma.done [#allocation4], 32
    $region41: #{tpu_custom_call.1} parent=1 // pred_fallthru
      _
    %361 = vsyncpa [#allocation3], 1
    %362 = vsyncpa [#allocation8], 1
    %363 = vsyncpa [#allocation4], 1
    %364 = vsyncpa [#allocation5], 1

</llo_original>
